<compile_context>
chip_gen: v7x
topology: tpu7x:2x2x1
jax: 0.10.0
libtpu: 0.0.40
codegen_flags: <defaults>
</compile_context>

<pallas_src>
import functools
import numpy as np
import jax
import jax.numpy as jnp
from jax import lax
from jax.experimental import pallas as pl
from jax.experimental.pallas import tpu as pltpu


_EPS = 1e-30    # keeps all-zero / masked rows NaN-free inside the clip rsqrt
_LANE = 128     # TPU lane width; K is zero-padded to a multiple of this


def _vmem_caps():
    """Generation-aware VMEM numbers (v7x: 64 MiB/TC, v5e/v6e: 128 MiB)."""
    cap = 64 * 1024 * 1024                      # conservative fallback (v7x per-TC)
    try:
        cap = int(pltpu.get_tpu_info().vmem_capacity_bytes)
    except Exception:
        pass
    budget = (cap * 3) // 4                     # used for batch-tile sizing
    limit = (cap * 7) // 8                      # leaves compiler-scratch headroom
    return budget, limit


_VMEM_BUDGET_BYTES, _VMEM_LIMIT_BYTES = _vmem_caps()


def _sublane_multiple(dtype):
    # f32 -> 8, bf16 -> 16, int8/fp8 -> 32 (second-minor tiling of the dtype).
    return max(8, 32 // np.dtype(dtype).itemsize)


# ----------------------------------------------------------------------------
# Pallas kernel: one batch tile of the GEP.forward hot path.
#   emb           = tg_tile @ bases_blockdiag                       (TB, Kpad)
#   clipped_emb   = row_clip(emb, clip0)           -> partial sum   (1, Kpad)
#   approx        = emb @ bases_blockdiag.T   (dot_general, no .T copy)
#   resid         = tg_tile - approx          (original precision)
#   clipped_resid = row_clip(resid, clip1)         -> partial sum   (1, P)
#   raw tg                                         -> partial sum   (1, P)
# Averages (sum over tiles / batch_size) are finished outside the kernel.
# ----------------------------------------------------------------------------
def gep_forward_kernel(tg_ref, bases_ref, emb_sum_ref, resid_sum_ref, tg_sum_ref,
                       *, clip0, clip1, total_rows, mask_tail):
    tb = tg_ref.shape[0]
    tg = tg_ref[...]                              # (TB, P), caller's dtype, streamed as-is
    if mask_tail:
        # Boundary tile: rows >= total_rows are undefined (no wrapper-side pad);
        # zero them before any math so they contribute exactly 0 to every sum.
        row = pl.program_id(0) * tb + lax.broadcasted_iota(jnp.int32, (tb, 1), 0)
        tg = jnp.where(row < total_rows, tg, 0.0)

    bases = bases_ref[...]                        # (P, Kpad) block-diagonal, resident

    # MXU matmul 1: per-row embedding. Cast to the matmul dtype only where the
    # operand is consumed (no extra full-precision copy live across matmuls).
    emb = jnp.dot(tg.astype(bases.dtype), bases,
                  preferred_element_type=jnp.float32)             # (TB, Kpad) f32

    # clip_column(concatenated_embedding, clip0, inplace=False)
    emb_sq = jnp.sum(emb * emb, axis=1, keepdims=True)            # (TB, 1)
    scale0 = jnp.minimum(clip0 * lax.rsqrt(jnp.maximum(emb_sq, _EPS)), 1.0)
    emb_sum_ref[...] = jnp.sum(emb * scale0, axis=0, keepdims=True
                               ).reshape(emb_sum_ref.shape)

    # get_approx_grad: emb @ bases.T without materializing the transpose
    # (contract the K axes; same MXU op, no XLU transpose).
    approx = lax.dot_general(
        emb.astype(bases.dtype), bases,
        dimension_numbers=(((1,), (1,)), ((), ())),
        preferred_element_type=jnp.float32)                       # (TB, P) f32

    # Residual / raw-grad sums use the ORIGINAL-precision streamed values.
    tg_f32 = tg.astype(jnp.float32)
    resid = tg_f32 - approx

    # clip_column(residual_gradients, clip1, inplace=True)  (same math)
    resid_sq = jnp.sum(resid * resid, axis=1, keepdims=True)
    scale1 = jnp.minimum(clip1 * lax.rsqrt(jnp.maximum(resid_sq, _EPS)), 1.0)
    resid_sum_ref[...] = jnp.sum(resid * scale1, axis=0, keepdims=True
                                 ).reshape(resid_sum_ref.shape)

    tg_sum_ref[...] = jnp.sum(tg_f32, axis=0, keepdims=True
                              ).reshape(tg_sum_ref.shape)


# ----------------------------------------------------------------------------
# Fused, jitted launcher: gridded pallas_call -> tiny cross-tile reduction.
# ----------------------------------------------------------------------------
@functools.partial(jax.jit, static_argnames=(
    "clip0", "clip1", "batch_size", "batch_tile", "out_k", "single_buffer_bases"))
def _gep_forward(target_grad, bases, *, clip0, clip1, batch_size, batch_tile,
                 out_k, single_buffer_bases):
    B, P = target_grad.shape
    Kp = bases.shape[1]
    tb = int(batch_tile)
    num_tiles = -(-B // tb)
    mask_tail = (num_tiles * tb != B)     # ragged last tile -> in-kernel masking

    kernel = functools.partial(gep_forward_kernel,
                               clip0=float(clip0), clip1=float(clip1),
                               total_rows=int(B), mask_tail=bool(mask_tail))

    if single_buffer_bases:
        # Constant block index -> second pipeline buffer is pure VMEM waste.
        bases_spec = pl.BlockSpec((P, Kp), lambda i: (0, 0),
                                  pipeline_mode=pl.Buffered(1))
    else:
        bases_spec = pl.BlockSpec((P, Kp), lambda i: (0, 0))

    partial_emb, partial_resid, partial_tg = pl.pallas_call(
        kernel,
        out_shape=(
            jax.ShapeDtypeStruct((num_tiles, 1, Kp), jnp.float32),
            jax.ShapeDtypeStruct((num_tiles, 1, P), jnp.float32),
            jax.ShapeDtypeStruct((num_tiles, 1, P), jnp.float32),
        ),
        grid=(num_tiles,),
        in_specs=[
            pl.BlockSpec((tb, P), lambda i: (i, 0)),       # streamed batch tiles
            bases_spec,                                     # bases resident in VMEM
        ],
        out_specs=(
            pl.BlockSpec((1, 1, Kp), lambda i: (i, 0, 0)),  # per-tile partial sums
            pl.BlockSpec((1, 1, P), lambda i: (i, 0, 0)),
            pl.BlockSpec((1, 1, P), lambda i: (i, 0, 0)),
        ),
        compiler_params=pltpu.CompilerParams(
            dimension_semantics=("parallel",),              # batch tiles independent
            vmem_limit_bytes=_VMEM_LIMIT_BYTES),
    )(target_grad, bases)

    inv_bs = jnp.float32(1.0 / float(batch_size))
    avg_emb = jnp.sum(partial_emb, axis=(0, 1))[:out_k] * inv_bs   # drop K padding
    avg_resid = jnp.sum(partial_resid, axis=(0, 1)) * inv_bs
    avg_tg = jnp.sum(partial_tg, axis=(0, 1)) * inv_bs
    return avg_emb, avg_resid, avg_tg


# ----------------------------------------------------------------------------
# Python-side GEP module (glue only; all hot-path compute is in the kernel).
# ----------------------------------------------------------------------------
class GEP:
    def __init__(self, num_bases, batch_size, clip0=1.0, clip1=1.0, power_iter=1,
                 matmul_dtype=jnp.bfloat16, batch_tile=None):
        self.num_bases = num_bases
        self.batch_size = batch_size
        self.clip0 = float(clip0)
        self.clip1 = float(clip1)
        self.power_iter = power_iter
        self.matmul_dtype = matmul_dtype
        self.batch_tile = batch_tile
        self.approx_error = {}
        self.selected_bases_list = None
        self.num_bases_list = None
        self.num_param_list = None
        self._bases = None          # cached block-diagonal (P, Kpad) bases on device
        self._k = None              # unpadded total number of bases
        self._single_buffer_bases = True   # probed once; falls back if unsupported

    def set_bases(self, selected_bases_list, num_param_list):
        self.selected_bases_list = selected_bases_list
        self.num_param_list = [int(p) for p in num_param_list]
        self.num_bases_list = [int(b.shape[1]) for b in selected_bases_list]
        P = sum(self.num_param_list)
        K = sum(self.num_bases_list)
        # Lane-dense K: zero columns are exact no-ops but keep the MXU output and
        # the emb-sum stores 128-lane aligned.
        Kp = max(_LANE, -(-K // _LANE) * _LANE)
        full = np.zeros((P, Kp), dtype=np.float32)
        off_p, off_k = 0, 0
        for b, n_p, n_k in zip(selected_bases_list,
                               self.num_param_list, self.num_bases_list):
            full[off_p:off_p + n_p, off_k:off_k + n_k] = np.asarray(b, dtype=np.float32)
            off_p += n_p
            off_k += n_k
        # Built once, cast to the matmul dtype, cached on device.
        self._k = K
        self._bases = jax.device_put(jnp.asarray(full, dtype=self.matmul_dtype))

    def _pick_batch_tile(self, B, P, Kp, in_dtype):
        mult = max(_sublane_multiple(in_dtype), _sublane_multiple(self.matmul_dtype))
        if self.batch_tile is not None:
            tb = -(-int(self.batch_tile) // mult) * mult
        else:
            in_size = np.dtype(in_dtype).itemsize
            mm_size = np.dtype(self.matmul_dtype).itemsize
            bases_bytes = 2 * P * Kp * mm_size          # worst case: double-buffered
            # streamed tile (x2 buffers) + mm-dtype operand + f32 approx/resid + emb
            per_row = P * (2 * in_size + mm_size + 12) + Kp * (mm_size + 8)
            budget = max(_VMEM_BUDGET_BYTES - bases_bytes, per_row * mult)
            tb = max(mult, (budget // per_row) // mult * mult)
            if tb >= 128:
                tb = (tb // 128) * 128                   # MXU-friendly M granularity
        if B <= mult:
            return int(B)                                # one block == the full batch
        tb = min(tb, (B // mult) * mult)                 # keep block within the array
        return int(max(tb, mult))

    def forward(self, target_grad, logging=False):
        if self._bases is None:
            raise ValueError("set_bases() must be called before forward()")
        tg = jnp.asarray(target_grad)                    # streamed as-is (no cast/pad)
        B, P = tg.shape
        assert P == self._bases.shape[0]
        Kp = int(self._bases.shape[1])
        tb = self._pick_batch_tile(B, P, Kp, tg.dtype)
        call = functools.partial(
            _gep_forward, tg, self._bases,
            clip0=self.clip0, clip1=self.clip1,
            batch_size=float(self.batch_size), batch_tile=tb, out_k=int(self._k))
        if self._single_buffer_bases:
            try:
                return call(single_buffer_bases=True)
            except Exception:
                # pipeline_mode=pl.Buffered(1) unsupported on this jax/libtpu;
                # fall back to the default double-buffered resident bases.
                self._single_buffer_bases = False
        return call(single_buffer_bases=False)

    __call__ = forward


# ----------------------------------------------------------------------------
# Pure-JAX reference (mirrors the torch code group-by-group) for verification.
# ----------------------------------------------------------------------------
def gep_forward_ref(target_grad, bases_list, clip0, clip1, batch_size):
    offset = 0
    emb_list, approx_list = [], []
    for b in bases_list:
        n_p = b.shape[0]
        grad = target_grad[:, offset:offset + n_p]
        emb = grad @ b
        emb_list.append(emb)
        approx_list.append(emb @ b.T)
        offset += n_p
    emb = jnp.concatenate(emb_list, axis=1)
    approx = jnp.concatenate(approx_list, axis=1)

    def row_clip(x, clip):
        norms = jnp.linalg.norm(x, axis=1, keepdims=True)
        scale = jnp.minimum(clip / norms, 1.0)
        return x * scale

    clipped_emb = row_clip(emb, clip0)
    resid = target_grad - approx
    clipped_resid = row_clip(resid, clip1)
    return (jnp.sum(clipped_emb, axis=0) / batch_size,
            jnp.sum(clipped_resid, axis=0) / batch_size,
            jnp.sum(target_grad, axis=0) / batch_size)


if __name__ == "__main__":
    key = jax.random.PRNGKey(0)
    k_grad, k_b0, k_b1 = jax.random.split(key, 3)

    batch = 12                               # not a tile multiple -> exercises masking
    num_param_list = [48, 80]                # P = 128 flattened params
    P = sum(num_param_list)
    num_bases_total = 24
    sqrt_np = np.sqrt(np.array(num_param_list, dtype=np.float64))
    num_bases_list = (num_bases_total * sqrt_np / sqrt_np.sum()).astype(int)

    bases_list = []
    for n_p, n_k, kk in zip(num_param_list, num_bases_list, [k_b0, k_b1]):
        m = jax.random.normal(kk, (n_p, int(n_k)), dtype=jnp.float32)
        q, _ = jnp.linalg.qr(m)              # orthonormal columns, like get_bases
        bases_list.append(q[:, :int(n_k)].astype(jnp.float32))

    target_grad = jax.random.normal(k_grad, (batch, P), dtype=jnp.float32)

    ref_emb, ref_resid, ref_tg = gep_forward_ref(
        target_grad, bases_list, 1.0, 1.0, float(batch))

    # (1) f32 matmul path with a small batch tile -> multi-tile grid with a ragged
    #     (masked) last tile; strict check against the group-wise reference.
    gep32 = GEP(num_bases_total, batch, clip0=1.0, clip1=1.0,
                matmul_dtype=jnp.float32, batch_tile=8)
    gep32.set_bases(bases_list, num_param_list)
    out32 = gep32(target_grad)
    jax.block_until_ready(out32)
    for got, ref in zip(out32, (ref_emb, ref_resid, ref_tg)):
        np.testing.assert_allclose(np.asarray(got), np.asarray(ref),
                                   rtol=1e-4, atol=1e-5)

    # (2) bf16 matmul path (default; f32 accumulation, original-precision
    #     residual / raw-grad sums) -- looser tolerance.
    gep16 = GEP(num_bases_total, batch, clip0=1.0, clip1=1.0)
    gep16.set_bases(bases_list, num_param_list)
    out16 = gep16(target_grad)
    jax.block_until_ready(out16)
    for got, ref in zip(out16, (ref_emb, ref_resid, ref_tg)):
        np.testing.assert_allclose(np.asarray(got), np.asarray(ref),
                                   rtol=3e-2, atol=3e-2)

    K = sum(int(k) for k in num_bases_list)
    assert out32[0].shape == (K,) and out32[1].shape == (P,) and out32[2].shape == (P,)
    assert out16[0].shape == (K,) and out16[1].shape == (P,) and out16[2].shape == (P,)
    print("KERNEL_OK")
</pallas_src>

<mosaic_0001>
module attributes {stable_mosaic.version = 11 : i64} {
  func.func @gep_forward_kernel(%arg0: i32, %arg1: memref<8x128xf32, #tpu.memory_space<vmem>>, %arg2: memref<128x128xf32, #tpu.memory_space<vmem>>, %arg3: memref<1x1x128xf32, #tpu.memory_space<vmem>>, %arg4: memref<1x1x128xf32, #tpu.memory_space<vmem>>, %arg5: memref<1x1x128xf32, #tpu.memory_space<vmem>>) attributes {dimension_semantics = [#tpu.dimension_semantics<parallel>], iteration_bounds = array<i64: 2>, scalar_prefetch = 0 : i64, scratch_operands = 0 : i64, tpu.core_type = #tpu.core_type<tc>, window_params = [{transform_indices = @transform_0, window_bounds = array<i64: 8, 128>}, {pipeline_mode = #tpu.pipeline_mode<synchronous>, transform_indices = @transform_1, window_bounds = array<i64: 128, 128>}, {transform_indices = @transform_2, window_bounds = array<i64: 1, 1, 128>}, {transform_indices = @transform_3, window_bounds = array<i64: 1, 1, 128>}, {transform_indices = @transform_4, window_bounds = array<i64: 1, 1, 128>}]} {
    %c0 = arith.constant 0 : index
    %c0_0 = arith.constant 0 : index
    %0 = vector.load %arg1[%c0, %c0_0] : memref<8x128xf32, #tpu.memory_space<vmem>>, vector<8x128xf32>
    %c8_i32 = arith.constant 8 : i32
    %1 = arith.muli %arg0, %c8_i32 : i32
    %2 = tpu.iota {dimensions = array<i32: 0>} : vector<8x1xi32>
    %3 = vector.broadcast %1 : i32 to vector<8x1xi32>
    %4 = arith.addi %3, %2 : vector<8x1xi32>
    %c12_i32 = arith.constant 12 : i32
    %5 = vector.broadcast %c12_i32 : i32 to vector<8x1xi32>
    %6 = arith.cmpi slt, %4, %5 : vector<8x1xi32>
    %cst = arith.constant 0.000000e+00 : f32
    %7 = vector.shape_cast %6 : vector<8x1xi1> to vector<8x1xi1>
    %8 = vector.broadcast %7 : vector<8x1xi1> to vector<8x128xi1>
    %9 = vector.broadcast %cst : f32 to vector<8x128xf32>
    %10 = arith.select %8, %0, %9 : vector<8x128xi1>, vector<8x128xf32>
    %c0_1 = arith.constant 0 : index
    %c0_2 = arith.constant 0 : index
    %11 = vector.load %arg2[%c0_1, %c0_2] : memref<128x128xf32, #tpu.memory_space<vmem>>, vector<128x128xf32>
    %cst_3 = arith.constant dense<0.000000e+00> : vector<8x128xf32>
    %12 = tpu.matmul %10, %11, %cst_3 {dimension_numbers = #tpu.dot_dimension_numbers<[1], [0], [0], [1], [0, 0, 1, 1], [], []>} : vector<8x128xf32>, vector<128x128xf32>, vector<8x128xf32> -> vector<8x128xf32>
    %13 = arith.mulf %12, %12 : vector<8x128xf32>
    %cst_4 = arith.constant dense<0.000000e+00> : vector<8xf32>
    %14 = vector.multi_reduction <add>, %13, %cst_4 [1] : vector<8x128xf32> to vector<8xf32>
    %15 = vector.shape_cast %14 : vector<8xf32> to vector<8x1xf32>
    %cst_5 = arith.constant 1.000000e-30 : f32
    %16 = vector.broadcast %cst_5 : f32 to vector<8x1xf32>
    %17 = arith.maximumf %15, %16 : vector<8x1xf32>
    %18 = math.rsqrt %17 : vector<8x1xf32>
    %cst_6 = arith.constant 1.000000e+00 : f32
    %19 = vector.broadcast %cst_6 : f32 to vector<8x1xf32>
    %20 = arith.mulf %19, %18 : vector<8x1xf32>
    %cst_7 = arith.constant 1.000000e+00 : f32
    %21 = vector.broadcast %cst_7 : f32 to vector<8x1xf32>
    %22 = arith.minimumf %20, %21 : vector<8x1xf32>
    %23 = vector.broadcast %22 : vector<8x1xf32> to vector<8x128xf32>
    %24 = arith.mulf %12, %23 : vector<8x128xf32>
    %cst_8 = arith.constant dense<0.000000e+00> : vector<128xf32>
    %25 = vector.multi_reduction <add>, %24, %cst_8 [0] : vector<8x128xf32> to vector<128xf32>
    %26 = vector.shape_cast %25 : vector<128xf32> to vector<1x128xf32>
    %27 = vector.shape_cast %26 : vector<1x128xf32> to vector<1x1x128xf32>
    %c0_9 = arith.constant 0 : index
    %c0_10 = arith.constant 0 : index
    %c0_11 = arith.constant 0 : index
    %28 = vector.load %arg3[%c0_9, %c0_10, %c0_11] : memref<1x1x128xf32, #tpu.memory_space<vmem>>, vector<1x1x128xf32>
    tpu.vector_store %arg3[%c0_9, %c0_10, %c0_11], %27 {strides = array<i32>} : memref<1x1x128xf32, #tpu.memory_space<vmem>>, vector<1x1x128xf32>,
    %cst_12 = arith.constant dense<0.000000e+00> : vector<8x128xf32>
    %29 = tpu.matmul %12, %11, %cst_12 {dimension_numbers = #tpu.dot_dimension_numbers<[1], [1], [0], [0], [0, 0, 1, 0], [], []>} : vector<8x128xf32>, vector<128x128xf32>, vector<8x128xf32> -> vector<8x128xf32>
    %30 = arith.subf %10, %29 : vector<8x128xf32>
    %31 = arith.mulf %30, %30 : vector<8x128xf32>
    %cst_13 = arith.constant dense<0.000000e+00> : vector<8xf32>
    %32 = vector.multi_reduction <add>, %31, %cst_13 [1] : vector<8x128xf32> to vector<8xf32>
    %33 = vector.shape_cast %32 : vector<8xf32> to vector<8x1xf32>
    %cst_14 = arith.constant 1.000000e-30 : f32
    %34 = vector.broadcast %cst_14 : f32 to vector<8x1xf32>
    %35 = arith.maximumf %33, %34 : vector<8x1xf32>
    %36 = math.rsqrt %35 : vector<8x1xf32>
    %cst_15 = arith.constant 1.000000e+00 : f32
    %37 = vector.broadcast %cst_15 : f32 to vector<8x1xf32>
    %38 = arith.mulf %37, %36 : vector<8x1xf32>
    %cst_16 = arith.constant 1.000000e+00 : f32
    %39 = vector.broadcast %cst_16 : f32 to vector<8x1xf32>
    %40 = arith.minimumf %38, %39 : vector<8x1xf32>
    %41 = vector.broadcast %40 : vector<8x1xf32> to vector<8x128xf32>
    %42 = arith.mulf %30, %41 : vector<8x128xf32>
    %cst_17 = arith.constant dense<0.000000e+00> : vector<128xf32>
    %43 = vector.multi_reduction <add>, %42, %cst_17 [0] : vector<8x128xf32> to vector<128xf32>
    %44 = vector.shape_cast %43 : vector<128xf32> to vector<1x128xf32>
    %45 = vector.shape_cast %44 : vector<1x128xf32> to vector<1x1x128xf32>
    %c0_18 = arith.constant 0 : index
    %c0_19 = arith.constant 0 : index
    %c0_20 = arith.constant 0 : index
    %46 = vector.load %arg4[%c0_18, %c0_19, %c0_20] : memref<1x1x128xf32, #tpu.memory_space<vmem>>, vector<1x1x128xf32>
    tpu.vector_store %arg4[%c0_18, %c0_19, %c0_20], %45 {strides = array<i32>} : memref<1x1x128xf32, #tpu.memory_space<vmem>>, vector<1x1x128xf32>,
    %cst_21 = arith.constant dense<0.000000e+00> : vector<128xf32>
    %47 = vector.multi_reduction <add>, %10, %cst_21 [0] : vector<8x128xf32> to vector<128xf32>
    %48 = vector.shape_cast %47 : vector<128xf32> to vector<1x128xf32>
    %49 = vector.shape_cast %48 : vector<1x128xf32> to vector<1x1x128xf32>
    %c0_22 = arith.constant 0 : index
    %c0_23 = arith.constant 0 : index
    %c0_24 = arith.constant 0 : index
    %50 = vector.load %arg5[%c0_22, %c0_23, %c0_24] : memref<1x1x128xf32, #tpu.memory_space<vmem>>, vector<1x1x128xf32>
    tpu.vector_store %arg5[%c0_22, %c0_23, %c0_24], %49 {strides = array<i32>} : memref<1x1x128xf32, #tpu.memory_space<vmem>>, vector<1x1x128xf32>,
    return
  }
  func.func @transform_0(%arg0: i32) -> (i32, i32) {
    %c0_i32 = arith.constant 0 : i32
    %c0_i32_0 = arith.constant 0 : i32
    return %arg0, %c0_i32 : i32, i32
  }
  func.func @transform_1(%arg0: i32) -> (i32, i32) {
    %c0_i32 = arith.constant 0 : i32
    %c0_i32_0 = arith.constant 0 : i32
    %c0_i32_1 = arith.constant 0 : i32
    return %c0_i32, %c0_i32_0 : i32, i32
  }
  func.func @transform_2(%arg0: i32) -> (i32, i32, i32) {
    %c0_i32 = arith.constant 0 : i32
    %c0_i32_0 = arith.constant 0 : i32
    %c0_i32_1 = arith.constant 0 : i32
    return %arg0, %c0_i32, %c0_i32_0 : i32, i32, i32
  }
  func.func @transform_3(%arg0: i32) -> (i32, i32, i32) {
    %c0_i32 = arith.constant 0 : i32
    %c0_i32_0 = arith.constant 0 : i32
    %c0_i32_1 = arith.constant 0 : i32
    return %arg0, %c0_i32, %c0_i32_0 : i32, i32, i32
  }
  func.func @transform_4(%arg0: i32) -> (i32, i32, i32) {
    %c0_i32 = arith.constant 0 : i32
    %c0_i32_0 = arith.constant 0 : i32
    %c0_i32_1 = arith.constant 0 : i32
    return %arg0, %c0_i32, %c0_i32_0 : i32, i32, i32
  }
}

module attributes {stable_mosaic.version = 11 : i64} {
  func.func @gep_forward_kernel(%arg0: i32, %arg1: memref<8x128xf32, #tpu.memory_space<vmem>>, %arg2: memref<128x128xf32, #tpu.memory_space<vmem>>, %arg3: memref<1x1x128xf32, #tpu.memory_space<vmem>>, %arg4: memref<1x1x128xf32, #tpu.memory_space<vmem>>, %arg5: memref<1x1x128xf32, #tpu.memory_space<vmem>>) attributes {dimension_semantics = [#tpu.dimension_semantics<parallel>], iteration_bounds = array<i64: 2>, scalar_prefetch = 0 : i64, scratch_operands = 0 : i64, tpu.core_type = #tpu.core_type<tc>, window_params = [{transform_indices = @transform_0, window_bounds = array<i64: 8, 128>}, {pipeline_mode = #tpu.pipeline_mode<synchronous>, transform_indices = @transform_1, window_bounds = array<i64: 128, 128>}, {transform_indices = @transform_2, window_bounds = array<i64: 1, 1, 128>}, {transform_indices = @transform_3, window_bounds = array<i64: 1, 1, 128>}, {transform_indices = @transform_4, window_bounds = array<i64: 1, 1, 128>}]} {
    %c0 = arith.constant 0 : index
    %c0_0 = arith.constant 0 : index
    %0 = vector.load %arg1[%c0, %c0_0] : memref<8x128xf32, #tpu.memory_space<vmem>>, vector<8x128xf32>
    %c8_i32 = arith.constant 8 : i32
    %1 = arith.muli %arg0, %c8_i32 : i32
    %2 = tpu.iota {dimensions = array<i32: 0>} : vector<8x1xi32>
    %3 = vector.broadcast %1 : i32 to vector<8x1xi32>
    %4 = arith.addi %3, %2 : vector<8x1xi32>
    %c12_i32 = arith.constant 12 : i32
    %5 = vector.broadcast %c12_i32 : i32 to vector<8x1xi32>
    %6 = arith.cmpi slt, %4, %5 : vector<8x1xi32>
    %cst = arith.constant 0.000000e+00 : f32
    %7 = vector.shape_cast %6 : vector<8x1xi1> to vector<8x1xi1>
    %8 = vector.broadcast %7 : vector<8x1xi1> to vector<8x128xi1>
    %9 = vector.broadcast %cst : f32 to vector<8x128xf32>
    %10 = arith.select %8, %0, %9 : vector<8x128xi1>, vector<8x128xf32>
    %c0_1 = arith.constant 0 : index
    %c0_2 = arith.constant 0 : index
    %11 = vector.load %arg2[%c0_1, %c0_2] : memref<128x128xf32, #tpu.memory_space<vmem>>, vector<128x128xf32>
    %cst_3 = arith.constant dense<0.000000e+00> : vector<8x128xf32>
    %12 = tpu.matmul %10, %11, %cst_3 {dimension_numbers = #tpu.dot_dimension_numbers<[1], [0], [0], [1], [0, 0, 1, 1], [], []>} : vector<8x128xf32>, vector<128x128xf32>, vector<8x128xf32> -> vector<8x128xf32>
    %13 = arith.mulf %12, %12 : vector<8x128xf32>
    %cst_4 = arith.constant dense<0.000000e+00> : vector<8xf32>
    %14 = vector.multi_reduction <add>, %13, %cst_4 [1] : vector<8x128xf32> to vector<8xf32>
    %15 = vector.shape_cast %14 : vector<8xf32> to vector<8x1xf32>
    %cst_5 = arith.constant 1.000000e-30 : f32
    %16 = vector.broadcast %cst_5 : f32 to vector<8x1xf32>
    %17 = arith.maximumf %15, %16 : vector<8x1xf32>
    %18 = math.rsqrt %17 : vector<8x1xf32>
    %cst_6 = arith.constant 1.000000e+00 : f32
    %19 = vector.broadcast %cst_6 : f32 to vector<8x1xf32>
    %20 = arith.mulf %19, %18 : vector<8x1xf32>
    %cst_7 = arith.constant 1.000000e+00 : f32
    %21 = vector.broadcast %cst_7 : f32 to vector<8x1xf32>
    %22 = arith.minimumf %20, %21 : vector<8x1xf32>
    %23 = vector.broadcast %22 : vector<8x1xf32> to vector<8x128xf32>
    %24 = arith.mulf %12, %23 : vector<8x128xf32>
    %cst_8 = arith.constant dense<0.000000e+00> : vector<128xf32>
    %25 = vector.multi_reduction <add>, %24, %cst_8 [0] : vector<8x128xf32> to vector<128xf32>
    %26 = vector.shape_cast %25 : vector<128xf32> to vector<1x128xf32>
    %27 = vector.shape_cast %26 : vector<1x128xf32> to vector<1x1x128xf32>
    %c0_9 = arith.constant 0 : index
    %c0_10 = arith.constant 0 : index
    %c0_11 = arith.constant 0 : index
    %28 = vector.load %arg3[%c0_9, %c0_10, %c0_11] : memref<1x1x128xf32, #tpu.memory_space<vmem>>, vector<1x1x128xf32>
    tpu.vector_store %arg3[%c0_9, %c0_10, %c0_11], %27 {strides = array<i32>} : memref<1x1x128xf32, #tpu.memory_space<vmem>>, vector<1x1x128xf32>,
    %cst_12 = arith.constant dense<0.000000e+00> : vector<8x128xf32>
    %29 = tpu.matmul %12, %11, %cst_12 {dimension_numbers = #tpu.dot_dimension_numbers<[1], [1], [0], [0], [0, 0, 1, 0], [], []>} : vector<8x128xf32>, vector<128x128xf32>, vector<8x128xf32> -> vector<8x128xf32>
    %30 = arith.subf %10, %29 : vector<8x128xf32>
    %31 = arith.mulf %30, %30 : vector<8x128xf32>
    %cst_13 = arith.constant dense<0.000000e+00> : vector<8xf32>
    %32 = vector.multi_reduction <add>, %31, %cst_13 [1] : vector<8x128xf32> to vector<8xf32>
    %33 = vector.shape_cast %32 : vector<8xf32> to vector<8x1xf32>
    %cst_14 = arith.constant 1.000000e-30 : f32
    %34 = vector.broadcast %cst_14 : f32 to vector<8x1xf32>
    %35 = arith.maximumf %33, %34 : vector<8x1xf32>
    %36 = math.rsqrt %35 : vector<8x1xf32>
    %cst_15 = arith.constant 1.000000e+00 : f32
    %37 = vector.broadcast %cst_15 : f32 to vector<8x1xf32>
    %38 = arith.mulf %37, %36 : vector<8x1xf32>
    %cst_16 = arith.constant 1.000000e+00 : f32
    %39 = vector.broadcast %cst_16 : f32 to vector<8x1xf32>
    %40 = arith.minimumf %38, %39 : vector<8x1xf32>
    %41 = vector.broadcast %40 : vector<8x1xf32> to vector<8x128xf32>
    %42 = arith.mulf %30, %41 : vector<8x128xf32>
    %cst_17 = arith.constant dense<0.000000e+00> : vector<128xf32>
    %43 = vector.multi_reduction <add>, %42, %cst_17 [0] : vector<8x128xf32> to vector<128xf32>
    %44 = vector.shape_cast %43 : vector<128xf32> to vector<1x128xf32>
    %45 = vector.shape_cast %44 : vector<1x128xf32> to vector<1x1x128xf32>
    %c0_18 = arith.constant 0 : index
    %c0_19 = arith.constant 0 : index
    %c0_20 = arith.constant 0 : index
    %46 = vector.load %arg4[%c0_18, %c0_19, %c0_20] : memref<1x1x128xf32, #tpu.memory_space<vmem>>, vector<1x1x128xf32>
    tpu.vector_store %arg4[%c0_18, %c0_19, %c0_20], %45 {strides = array<i32>} : memref<1x1x128xf32, #tpu.memory_space<vmem>>, vector<1x1x128xf32>,
    %cst_21 = arith.constant dense<0.000000e+00> : vector<128xf32>
    %47 = vector.multi_reduction <add>, %10, %cst_21 [0] : vector<8x128xf32> to vector<128xf32>
    %48 = vector.shape_cast %47 : vector<128xf32> to vector<1x128xf32>
    %49 = vector.shape_cast %48 : vector<1x128xf32> to vector<1x1x128xf32>
    %c0_22 = arith.constant 0 : index
    %c0_23 = arith.constant 0 : index
    %c0_24 = arith.constant 0 : index
    %50 = vector.load %arg5[%c0_22, %c0_23, %c0_24] : memref<1x1x128xf32, #tpu.memory_space<vmem>>, vector<1x1x128xf32>
    tpu.vector_store %arg5[%c0_22, %c0_23, %c0_24], %49 {strides = array<i32>} : memref<1x1x128xf32, #tpu.memory_space<vmem>>, vector<1x1x128xf32>,
    return
  }
  func.func @transform_0(%arg0: i32) -> (i32, i32) {
    %c0_i32 = arith.constant 0 : i32
    %c0_i32_0 = arith.constant 0 : i32
    return %arg0, %c0_i32 : i32, i32
  }
  func.func @transform_1(%arg0: i32) -> (i32, i32) {
    %c0_i32 = arith.constant 0 : i32
    %c0_i32_0 = arith.constant 0 : i32
    %c0_i32_1 = arith.constant 0 : i32
    return %c0_i32, %c0_i32_0 : i32, i32
  }
  func.func @transform_2(%arg0: i32) -> (i32, i32, i32) {
    %c0_i32 = arith.constant 0 : i32
    %c0_i32_0 = arith.constant 0 : i32
    %c0_i32_1 = arith.constant 0 : i32
    return %arg0, %c0_i32, %c0_i32_0 : i32, i32, i32
  }
  func.func @transform_3(%arg0: i32) -> (i32, i32, i32) {
    %c0_i32 = arith.constant 0 : i32
    %c0_i32_0 = arith.constant 0 : i32
    %c0_i32_1 = arith.constant 0 : i32
    return %arg0, %c0_i32, %c0_i32_0 : i32, i32, i32
  }
  func.func @transform_4(%arg0: i32) -> (i32, i32, i32) {
    %c0_i32 = arith.constant 0 : i32
    %c0_i32_0 = arith.constant 0 : i32
    %c0_i32_1 = arith.constant 0 : i32
    return %arg0, %c0_i32, %c0_i32_0 : i32, i32, i32
  }
}

</mosaic_0001>

<llo_original>
// kernel: _gep_forward.1
$region0: #{_gep_forward.1}
  #allocation0 [shape = 'u32[]', space=smem, size = 0x4, offset = 0x4, fixed_abs, tag = 'smem constant byte address 0x4 - core index']
  #allocation1 [shape = 'u32[144,128]{1,0:T(1,128)}', space=vmem, size = 0x12000, scoped, tag = 'internal scratch']
  %s0 = inlined_call_operand.hbm [shape: f32[12,128], index: 0, kind: input, shape index: {}]
  %s1 = inlined_call_operand.hbm [shape: f32[128,128], index: 1, kind: input, shape index: {}]
  %s2 = inlined_call_operand.vmem [shape: f32[2,1,128], index: 2, kind: output, shape index: {0}]
  %s3 = inlined_call_operand.vmem [shape: f32[2,1,128], index: 3, kind: output, shape index: {1}]
  %s4 = inlined_call_operand.vmem [shape: f32[2,1,128], index: 4, kind: output, shape index: {2}]
  %5 = xla_tuple %s2, %s3, %s4
  %s6 = sld [smem:[#allocation0]]
  $region65: #{_gep_forward.1} parent=0
    _
  %s8 = ssub.s32 1, %s6
  %s9 = scalar_select 0, %s8, %s6
  $region1: #{_gep_forward.1} parent=0
    #allocation2 [shape = 'u8[8192]{0}', space=vmem, size = 0x2000, scoped, tag = 'input window, operand 0']
    #allocation3 [shape = 's32[2]{0}', space=sflag, size = 0x8, scoped, tag = 'scoped memory for _gep_forward.1']
    #allocation4 [shape = 'u8[65536]{0}', space=vmem, size = 0x10000, scoped, tag = 'input window, operand 1, single buffered']
    #allocation5 [shape = 's32[1]{0}', space=sflag, size = 0x4, scoped, tag = 'scoped memory for _gep_forward.1']
    %10 = vsyncpa [#allocation3], 0
    %s11 = scalar_lea.sflag [#allocation3], 1
    %12 = vsyncpa %s11, 0
    %13 = vsyncpa [#allocation5], 0
    loop: start=0, step=1, limit=4
    $region2: #{_gep_forward.1} parent=1 // loop_pre_header
      _
    $region3: #{_gep_forward.1} parent=1 // loop_header
      %s15 = sphi 0, %s19
      %p16 = scmp.ge.s32.totalorder %s15, 4
      %s25 = sphi 0, %s27
      %s28 = sphi 0, %s25
      %s29 = sphi 0, %s28
      %s45 = sphi 0, %s29
      %s49 = sphi 0, %s49
      %s51 = sphi 0, %s49
      %s52 = sphi 0, %s51
      %s66 = sphi 0, %s52
      %s72 = sphi 0, %s74
      %s75 = sphi 0, %s72
      %s76 = sphi 0, %s75
      %s92 = sphi 0, %s76
      %s98 = sphi 0, %s100
      %s101 = sphi 0, %s98
      %s102 = sphi 0, %s101
      %s118 = sphi 0, %s102
      %s124 = sphi 0, %s126
      %s127 = sphi 0, %s124
      %s128 = sphi 0, %s127
      %s144 = sphi 0, %s128
    $region4: #{_gep_forward.1} parent=1 // loop_header_branch
      %18 = sbr.rel (%p16) target = $region8
    $region5: #{_gep_forward.1} parent=1 // loop_body
      %s20 = ssub.s32 %s15, 1
      %s21 = ssub.s32 %s15, 2
      %s22 = sadd.s32 %s15, 1
      %s23 = ssub.s32 %s15, %s22
      %p24 = scmp.eq.s32.totalorder %s23, 0
      %s26 = sadd.s32 %s25, 1
      %s27 = scalar_select %p24, %s25, %s26
      %p30 = pneg %p24
      %p31 = scmp.eq.s32.totalorder %s15, 1
      %p32 = por %p30, %p31
      %p33 = scmp.ne.s32.totalorder %s25, %s28
      %p34 = scmp.eq.s32.totalorder %s15, 0
      %p35 = por %p33, %p34
      %p36 = scmp.ne.s32.totalorder %s25, %s28
      %p37 = scmp.eq.s32.totalorder %s20, 1
      %p38 = por %p36, %p37
      %p39 = scmp.ne.s32.totalorder %s28, %s29
      %p40 = scmp.eq.s32.totalorder %s20, 0
      %p41 = por %p39, %p40
      %p42 = scmp.ne.s32.totalorder %s28, %s29
      %p43 = scmp.eq.s32.totalorder %s21, 1
      %p44 = por %p42, %p43
      %p46 = scmp.ne.s32.totalorder %s29, %s45
      %p47 = scmp.eq.s32.totalorder %s21, 0
      %p48 = por %p46, %p47
      %s50 = sadd.s32 %s49, 1
      %p53 = scmp.eq.s32.totalorder %s15, 1
      %p54 = scmp.ne.s32.totalorder %s49, %s51
      %p55 = scmp.eq.s32.totalorder %s15, 0
      %p56 = por %p54, %p55
      %p57 = scmp.ne.s32.totalorder %s49, %s51
      %p58 = scmp.eq.s32.totalorder %s20, 1
      %p59 = por %p57, %p58
      %p60 = scmp.ne.s32.totalorder %s51, %s52
      %p61 = scmp.eq.s32.totalorder %s20, 0
      %p62 = por %p60, %p61
      %p63 = scmp.ne.s32.totalorder %s51, %s52
      %p64 = scmp.eq.s32.totalorder %s21, 1
      %p65 = por %p63, %p64
      %p67 = scmp.ne.s32.totalorder %s52, %s66
      %p68 = scmp.eq.s32.totalorder %s21, 0
      %p69 = por %p67, %p68
      %s70 = ssub.s32 %s15, %s22
      %p71 = scmp.eq.s32.totalorder %s70, 0
      %s73 = sadd.s32 %s72, 1
      %s74 = scalar_select %p71, %s72, %s73
      %p77 = pneg %p71
      %p78 = scmp.eq.s32.totalorder %s15, 1
      %p79 = por %p77, %p78
      %p80 = scmp.ne.s32.totalorder %s72, %s75
      %p81 = scmp.eq.s32.totalorder %s15, 0
      %p82 = por %p80, %p81
      %p83 = scmp.ne.s32.totalorder %s72, %s75
      %p84 = scmp.eq.s32.totalorder %s20, 1
      %p85 = por %p83, %p84
      %p86 = scmp.ne.s32.totalorder %s75, %s76
      %p87 = scmp.eq.s32.totalorder %s20, 0
      %p88 = por %p86, %p87
      %p89 = scmp.ne.s32.totalorder %s75, %s76
      %p90 = scmp.eq.s32.totalorder %s21, 1
      %p91 = por %p89, %p90
      %p93 = scmp.ne.s32.totalorder %s76, %s92
      %p94 = scmp.eq.s32.totalorder %s21, 0
      %p95 = por %p93, %p94
      %s96 = ssub.s32 %s15, %s22
      %p97 = scmp.eq.s32.totalorder %s96, 0
      %s99 = sadd.s32 %s98, 1
      %s100 = scalar_select %p97, %s98, %s99
      %p103 = pneg %p97
      %p104 = scmp.eq.s32.totalorder %s15, 1
      %p105 = por %p103, %p104
      %p106 = scmp.ne.s32.totalorder %s98, %s101
      %p107 = scmp.eq.s32.totalorder %s15, 0
      %p108 = por %p106, %p107
      %p109 = scmp.ne.s32.totalorder %s98, %s101
      %p110 = scmp.eq.s32.totalorder %s20, 1
      %p111 = por %p109, %p110
      %p112 = scmp.ne.s32.totalorder %s101, %s102
      %p113 = scmp.eq.s32.totalorder %s20, 0
      %p114 = por %p112, %p113
      %p115 = scmp.ne.s32.totalorder %s101, %s102
      %p116 = scmp.eq.s32.totalorder %s21, 1
      %p117 = por %p115, %p116
      %p119 = scmp.ne.s32.totalorder %s102, %s118
      %p120 = scmp.eq.s32.totalorder %s21, 0
      %p121 = por %p119, %p120
      %s122 = ssub.s32 %s15, %s22
      %p123 = scmp.eq.s32.totalorder %s122, 0
      %s125 = sadd.s32 %s124, 1
      %s126 = scalar_select %p123, %s124, %s125
      %p129 = pneg %p123
      %p130 = scmp.eq.s32.totalorder %s15, 1
      %p131 = por %p129, %p130
      %p132 = scmp.ne.s32.totalorder %s124, %s127
      %p133 = scmp.eq.s32.totalorder %s15, 0
      %p134 = por %p132, %p133
      %p135 = scmp.ne.s32.totalorder %s124, %s127
      %p136 = scmp.eq.s32.totalorder %s20, 1
      %p137 = por %p135, %p136
      %p138 = scmp.ne.s32.totalorder %s127, %s128
      %p139 = scmp.eq.s32.totalorder %s20, 0
      %p140 = por %p138, %p139
      %p141 = scmp.ne.s32.totalorder %s127, %s128
      %p142 = scmp.eq.s32.totalorder %s21, 1
      %p143 = por %p141, %p142
      %p145 = scmp.ne.s32.totalorder %s128, %s144
      %p146 = scmp.eq.s32.totalorder %s21, 0
      %p147 = por %p145, %p146
      %p148 = scmp.le.s32.totalorder 1, %s15
      %p149 = scmp.lt.s32.totalorder %s15, 3
      %p150 = pnand %p148, %p149
      %p151 = pneg %p150
      // Predicated region
      $region9: #{_gep_forward.1} parent=5 // pred_check
        _
      $region10: #{_gep_forward.1} parent=5 // pred_check_branch
        %153 = sbr.rel (%p150) target = $region12
      $region11: #{_gep_forward.1} parent=5 // pred_region
        %s154 = ssub.s32 %s15, 1
        // Predicated region
        $region13: #{_gep_forward.1} parent=11 // pred_check
          %p155 = pneg %p62
        $region14: #{_gep_forward.1} parent=11 // pred_check_branch
          %157 = sbr.rel (%p155) target = $region16
        $region15: #{_gep_forward.1} parent=11 // pred_region
          %s159 = ssub.s32 2048, 2048
          %160 = vsyncadd [#allocation5], %s159
          %s161 = sshll.u32 [#allocation4], 4
          %s162 = int_to_ptr.vmem [resolvable:$true] %s161
          %167 = dma.hbm_to_vmem [thread:$0]  %s1, 2048, %s162, [#allocation5], 128, 128, 8
        $region16: #{_gep_forward.1} parent=11 // pred_fallthru
          _
      $region12: #{_gep_forward.1} parent=5 // pred_fallthru
        _
      %p168 = scmp.lt.s32.totalorder %s15, 2
      // Predicated region
      $region17: #{_gep_forward.1} parent=5 // pred_check
        %p169 = pneg %p168
      $region18: #{_gep_forward.1} parent=5 // pred_check_branch
        %171 = sbr.rel (%p169) target = $region20
      $region19: #{_gep_forward.1} parent=5 // pred_region
        // Predicated region
        $region21: #{_gep_forward.1} parent=19 // pred_check
          %p172 = pneg %p35
        $region22: #{_gep_forward.1} parent=19 // pred_check_branch
          %174 = sbr.rel (%p172) target = $region24
        $region23: #{_gep_forward.1} parent=19 // pred_region
          %s175 = sand.u32 %s25, 1
          %s176 = scalar_lea.sflag [#allocation3], %s175
          %s177 = sand.u32 %s25, 1
          %s178 = smul.addr %s177, 8
          %s179 = scalar_lea.vmem [#allocation2], %s178
          %s181 = ssub.s32 128, 128
          %182 = vsyncadd %s176, %s181
          %s183 = smul.addr %s15, 128
          %s184 = scalar_lea.hbm %s0, %s183
          %s186 = sshll.u32 %s179, 4
          %s187 = int_to_ptr.vmem [resolvable:$true] %s186
          %189 = dma.hbm_to_vmem [thread:$0]  %s184, 128, %s187, %s176
        $region24: #{_gep_forward.1} parent=19 // pred_fallthru
          _
      $region20: #{_gep_forward.1} parent=5 // pred_fallthru
        _
      %p190 = scmp.le.s32.totalorder 1, %s15
      %p191 = scmp.lt.s32.totalorder %s15, 3
      %p192 = pnand %p190, %p191
      %p193 = pneg %p192
      // Predicated region
      $region25: #{_gep_forward.1} parent=5 // pred_check
        _
      $region26: #{_gep_forward.1} parent=5 // pred_check_branch
        %195 = sbr.rel (%p192) target = $region28
      $region27: #{_gep_forward.1} parent=5 // pred_region
        %s196 = ssub.s32 %s15, 1
        %s197 = sand.u32 %s28, 1
        %s198 = scalar_lea.sflag [#allocation3], %s197
        %s199 = sand.u32 %s28, 1
        %s200 = smul.addr %s199, 8
        %s201 = scalar_lea.vmem [#allocation2], %s200
        // Predicated region
        $region29: #{_gep_forward.1} parent=27 // pred_check
          %p202 = pneg %p41
        $region30: #{_gep_forward.1} parent=27 // pred_check_branch
          %204 = sbr.rel (%p202) target = $region32
        $region31: #{_gep_forward.1} parent=27 // pred_region
          %205 = dma.done %s198, 128
        $region32: #{_gep_forward.1} parent=27 // pred_fallthru
          _
        // Predicated region
        $region33: #{_gep_forward.1} parent=27 // pred_check
          %p206 = pneg %p62
        $region34: #{_gep_forward.1} parent=27 // pred_check_branch
          %208 = sbr.rel (%p206) target = $region36
        $region35: #{_gep_forward.1} parent=27 // pred_region
          %209 = dma.done [#allocation5], 2048
        $region36: #{_gep_forward.1} parent=27 // pred_fallthru
          _
        %s210 = sand.u32 %s28, 1
        %s211 = scalar_lea.sflag [#allocation3], %s210
        %s212 = sand.u32 %s28, 1
        %s213 = smul.addr %s212, 8
        %s214 = scalar_lea.vmem [#allocation2], %s213
        %p215 = pneg %p41
        %p216 = pneg %p38
        %p217 = pneg %p62
        %p218 = pneg %p59
        %p219 = pneg %p88
        %p220 = pneg %p85
        %p221 = scmp.lt.s32.totalorder %s20, 1
        %s222 = scalar_select %p221, %s20, 1
        %s223 = scalar_lea.vmem %s2, %s222
        %p224 = pneg %p114
        %p225 = pneg %p111
        %p226 = scmp.lt.s32.totalorder %s20, 1
        %s227 = scalar_select %p226, %s20, 1
        %s228 = scalar_lea.vmem %s3, %s227
        %p229 = pneg %p140
        %p230 = pneg %p137
        %p231 = scmp.lt.s32.totalorder %s20, 1
        %s232 = scalar_select %p231, %s20, 1
        %s233 = scalar_lea.vmem %s4, %s232
        %p234 = scmp.lt.s32.totalorder %s20, 1
        %s235 = scalar_select %p234, %s20, 1
        %s236 = scalar_lea.vmem %s2, %s235
        %p237 = scmp.lt.s32.totalorder %s20, 1
        %s238 = scalar_select %p237, %s20, 1
        %s239 = scalar_lea.vmem %s3, %s238
        %p240 = scmp.lt.s32.totalorder %s20, 1
        %s241 = scalar_select %p240, %s20, 1
        %s242 = scalar_lea.vmem %s4, %s241
        %v243 = vld [vmem:[%s201] sm:$0xff]
        %s244 = smul.u32 %s20, 8
        %v245 = vlaneseq
        %v246 = vshrl.u32 %v245, 7
        %v247 = vstv %s244
        %v248 = vadd.s32 %v247, %v246
        %vm249 = vcmp.lt.s32.totalorder %v248, 12
        %v250 = vsel %vm249, 1, 0
        %vm251 = vcmp.eq.s32.totalorder %v250, 1
        %v252 = vsel %vm251, %v243, 0.0
        %v253 = vld [vmem:[#allocation4] sm:$0xff]
        %v254 = vld [vmem:[#allocation4 + $0x8] sm:$0xff]
        %v255 = vld [vmem:[#allocation4 + $0x10] sm:$0xff]
        %v256 = vld [vmem:[#allocation4 + $0x18] sm:$0xff]
        %v257 = vld [vmem:[#allocation4 + $0x20] sm:$0xff]
        %v258 = vld [vmem:[#allocation4 + $0x28] sm:$0xff]
        %v259 = vld [vmem:[#allocation4 + $0x30] sm:$0xff]
        %v260 = vld [vmem:[#allocation4 + $0x38] sm:$0xff]
        %v261 = vld [vmem:[#allocation4 + $0x40] sm:$0xff]
        %v262 = vld [vmem:[#allocation4 + $0x48] sm:$0xff]
        %v263 = vld [vmem:[#allocation4 + $0x50] sm:$0xff]
        %v264 = vld [vmem:[#allocation4 + $0x58] sm:$0xff]
        %v265 = vld [vmem:[#allocation4 + $0x60] sm:$0xff]
        %v266 = vld [vmem:[#allocation4 + $0x68] sm:$0xff]
        %v267 = vld [vmem:[#allocation4 + $0x70] sm:$0xff]
        %v268 = vld [vmem:[#allocation4 + $0x78] sm:$0xff]
        %269 = vmatprep.subr.mxu0 0.0
        %270 = vmatpush1.msra.mxu0 %v253
        %271 = vmatprep.subr.mxu0 0.0
        %272 = vmatpush1.msra.mxu0 %v254
        %273 = vmatprep.subr.mxu0 0.0
        %274 = vmatpush1.msra.mxu0 %v255
        %275 = vmatprep.subr.mxu0 0.0
        %276 = vmatpush1.msra.mxu0 %v256
        %277 = vmatprep.subr.mxu0 0.0
        %278 = vmatpush1.msra.mxu0 %v257
        %279 = vmatprep.subr.mxu0 0.0
        %280 = vmatpush1.msra.mxu0 %v258
        %281 = vmatprep.subr.mxu0 0.0
        %282 = vmatpush1.msra.mxu0 %v259
        %283 = vmatprep.subr.mxu0 0.0
        %284 = vmatpush1.msra.mxu0 %v260
        %285 = vmatprep.subr.mxu0 0.0
        %286 = vmatpush1.msra.mxu0 %v261
        %287 = vmatprep.subr.mxu0 0.0
        %288 = vmatpush1.msra.mxu0 %v262
        %289 = vmatprep.subr.mxu0 0.0
        %290 = vmatpush1.msra.mxu0 %v263
        %291 = vmatprep.subr.mxu0 0.0
        %292 = vmatpush1.msra.mxu0 %v264
        %293 = vmatprep.subr.mxu0 0.0
        %294 = vmatpush1.msra.mxu0 %v265
        %295 = vmatprep.subr.mxu0 0.0
        %296 = vmatpush1.msra.mxu0 %v266
        %297 = vmatprep.subr.mxu0 0.0
        %298 = vmatpush1.msra.mxu0 %v267
        %299 = vmatprep.subr.mxu0 0.0
        %300 = vmatpush1.msra.mxu0 %v268
        %301 = vmatprep.subr.mxu0 0.0
        %302 = vmatpush1.msra.mxu0 0.0
        %303 = vmatprep.subr.mxu0 0.0
        %304 = vmatpush1.msra.mxu0 0.0
        %305 = vmatprep.subr.mxu0 0.0
        %306 = vmatpush1.msra.mxu0 0.0
        %307 = vmatprep.subr.mxu0 0.0
        %308 = vmatpush1.msra.mxu0 0.0
        %309 = vmatprep.subr.mxu0 0.0
        %310 = vmatpush1.msra.mxu0 0.0
        %311 = vmatprep.subr.mxu0 0.0
        %312 = vmatpush1.msra.mxu0 0.0
        %313 = vmatprep.subr.mxu0 0.0
        %314 = vmatpush1.msra.mxu0 0.0
        %315 = vmatprep.subr.mxu0 0.0
        %316 = vmatpush1.msra.mxu0 0.0
        %317 = vmatprep.subr.mxu0 0.0
        %318 = vmatpush1.msra.mxu0 0.0
        %319 = vmatprep.subr.mxu0 0.0
        %320 = vmatpush1.msra.mxu0 0.0
        %321 = vmatprep.subr.mxu0 0.0
        %322 = vmatpush1.msra.mxu0 0.0
        %323 = vmatprep.subr.mxu0 0.0
        %324 = vmatpush1.msra.mxu0 0.0
        %325 = vmatprep.subr.mxu0 0.0
        %326 = vmatpush1.msra.mxu0 0.0
        %327 = vmatprep.subr.mxu0 0.0
        %328 = vmatpush1.msra.mxu0 0.0
        %329 = vmatprep.subr.mxu0 0.0
        %330 = vmatpush1.msra.mxu0 0.0
        %331 = vmatprep.subr.mxu0 0.0
        %332 = vmatpush1.msra.mxu0 0.0
        %333 = vmatprep.mubr.f32.mxu0 0.0
        %334 = vmatmul.mubr.f32.gmra.mrb[0].mxu0 %v252
        %v335 = vpop.f32.mrb[0].mxu0
        %v336 = vadd.f32 0.0, %v335
        %v337 = vpop.f32.mrb[0].mxu0
        %338 = vdwg.mxu0
        %v339 = vmul.f32 %v336, %v336
        %340 = vadd.xlane.f32.xlu0 %v339
        %v341 = vpop.xlane.xlu0 %340
        %v342 = vmax.f32 %v341, 1e-30
        %v343 = vrsqrt.pop %v342
        %v344 = vmin.f32 %v343, 1.0
        %v345 = vmul.f32 %v336, %v344
        %v346 = vrot.slane %v345, 4
        %v347 = vadd.f32 %v345, %v346
        %v348 = vrot.slane %v347, 2
        %v349 = vadd.f32 %v347, %v348
        %v350 = vrot.slane %v349, 1
        %v351 = vadd.f32 %v349, %v350
        %352 = vst [vmem:[%s236] sm:$0x1] %v351
        %353 = vmatprep.subr.mxu0 0.0
        %354 = vmatpush1.xpose.msra.mxu0 %v253
        %355 = vmatprep.subr.mxu0 0.0
        %356 = vmatpush1.xpose.msra.mxu0 %v254
        %357 = vmatprep.subr.mxu0 0.0
        %358 = vmatpush1.xpose.msra.mxu0 %v255
        %359 = vmatprep.subr.mxu0 0.0
        %360 = vmatpush1.xpose.msra.mxu0 %v256
        %361 = vmatprep.subr.mxu0 0.0
        %362 = vmatpush1.xpose.msra.mxu0 %v257
        %363 = vmatprep.subr.mxu0 0.0
        %364 = vmatpush1.xpose.msra.mxu0 %v258
        %365 = vmatprep.subr.mxu0 0.0
        %366 = vmatpush1.xpose.msra.mxu0 %v259
        %367 = vmatprep.subr.mxu0 0.0
        %368 = vmatpush1.xpose.msra.mxu0 %v260
        %369 = vmatprep.subr.mxu0 0.0
        %370 = vmatpush1.xpose.msra.mxu0 %v261
        %371 = vmatprep.subr.mxu0 0.0
        %372 = vmatpush1.xpose.msra.mxu0 %v262
        %373 = vmatprep.subr.mxu0 0.0
        %374 = vmatpush1.xpose.msra.mxu0 %v263
        %375 = vmatprep.subr.mxu0 0.0
        %376 = vmatpush1.xpose.msra.mxu0 %v264
        %377 = vmatprep.subr.mxu0 0.0
        %378 = vmatpush1.xpose.msra.mxu0 %v265
        %379 = vmatprep.subr.mxu0 0.0
        %380 = vmatpush1.xpose.msra.mxu0 %v266
        %381 = vmatprep.subr.mxu0 0.0
        %382 = vmatpush1.xpose.msra.mxu0 %v267
        %383 = vmatprep.subr.mxu0 0.0
        %384 = vmatpush1.xpose.msra.mxu0 %v268
        %385 = vmatprep.subr.mxu0 0.0
        %386 = vmatpush1.xpose.msra.mxu0 0.0
        %387 = vmatprep.subr.mxu0 0.0
        %388 = vmatpush1.xpose.msra.mxu0 0.0
        %389 = vmatprep.subr.mxu0 0.0
        %390 = vmatpush1.xpose.msra.mxu0 0.0
        %391 = vmatprep.subr.mxu0 0.0
        %392 = vmatpush1.xpose.msra.mxu0 0.0
        %393 = vmatprep.subr.mxu0 0.0
        %394 = vmatpush1.xpose.msra.mxu0 0.0
        %395 = vmatprep.subr.mxu0 0.0
        %396 = vmatpush1.xpose.msra.mxu0 0.0
        %397 = vmatprep.subr.mxu0 0.0
        %398 = vmatpush1.xpose.msra.mxu0 0.0
        %399 = vmatprep.subr.mxu0 0.0
        %400 = vmatpush1.xpose.msra.mxu0 0.0
        %401 = vmatprep.subr.mxu0 0.0
        %402 = vmatpush1.xpose.msra.mxu0 0.0
        %403 = vmatprep.subr.mxu0 0.0
        %404 = vmatpush1.xpose.msra.mxu0 0.0
        %405 = vmatprep.subr.mxu0 0.0
        %406 = vmatpush1.xpose.msra.mxu0 0.0
        %407 = vmatprep.subr.mxu0 0.0
        %408 = vmatpush1.xpose.msra.mxu0 0.0
        %409 = vmatprep.subr.mxu0 0.0
        %410 = vmatpush1.xpose.msra.mxu0 0.0
        %411 = vmatprep.subr.mxu0 0.0
        %412 = vmatpush1.xpose.msra.mxu0 0.0
        %413 = vmatprep.subr.mxu0 0.0
        %414 = vmatpush1.xpose.msra.mxu0 0.0
        %415 = vmatprep.subr.mxu0 0.0
        %416 = vmatpush1.xpose.msra.mxu0 0.0
        %417 = vmatprep.mubr.f32.mxu0 0.0
        %418 = vmatmul.mubr.f32.gmra.mrb[0].mxu0 %v336
        %v419 = vpop.f32.mrb[0].mxu0
        %v420 = vadd.f32 0.0, %v419
        %v421 = vpop.f32.mrb[0].mxu0
        %422 = vdwg.mxu0
        %v423 = vsub.f32 %v252, %v420
        %v424 = vmul.f32 %v423, %v423
        %425 = vadd.xlane.f32.xlu0 %v424
        %v426 = vpop.xlane.xlu0 %425
        %v427 = vmax.f32 %v426, 1e-30
        %v428 = vrsqrt.pop %v427
        %v429 = vmin.f32 %v428, 1.0
        %v430 = vmul.f32 %v423, %v429
        %v431 = vrot.slane %v430, 4
        %v432 = vadd.f32 %v430, %v431
        %v433 = vrot.slane %v432, 2
        %v434 = vadd.f32 %v432, %v433
        %v435 = vrot.slane %v434, 1
        %v436 = vadd.f32 %v434, %v435
        %437 = vst [vmem:[%s239] sm:$0x1] %v436
        %v438 = vrot.slane %v252, 4
        %v439 = vadd.f32 %v252, %v438
        %v440 = vrot.slane %v439, 2
        %v441 = vadd.f32 %v439, %v440
        %v442 = vrot.slane %v441, 1
        %v443 = vadd.f32 %v441, %v442
        %444 = vst [vmem:[%s242] sm:$0x1] %v443
        %p445 = scmp.lt.s32.totalorder %s20, 1
        %s446 = scalar_select %p445, %s20, 1
        %s447 = scalar_lea.vmem %s2, %s446
        %p448 = scmp.lt.s32.totalorder %s20, 1
        %s449 = scalar_select %p448, %s20, 1
        %s450 = scalar_lea.vmem %s3, %s449
        %p451 = scmp.lt.s32.totalorder %s20, 1
        %s452 = scalar_select %p451, %s20, 1
        %s453 = scalar_lea.vmem %s4, %s452
        // Predicated region
        $region37: #{_gep_forward.1} parent=27 // pred_check
          %p454 = pneg %p85
        $region38: #{_gep_forward.1} parent=27 // pred_check_branch
          %456 = sbr.rel (%p454) target = $region40
        $region39: #{_gep_forward.1} parent=27 // pred_region
          _
        $region40: #{_gep_forward.1} parent=27 // pred_fallthru
          _
        // Predicated region
        $region41: #{_gep_forward.1} parent=27 // pred_check
          %p457 = pneg %p111
        $region42: #{_gep_forward.1} parent=27 // pred_check_branch
          %459 = sbr.rel (%p457) target = $region44
        $region43: #{_gep_forward.1} parent=27 // pred_region
          _
        $region44: #{_gep_forward.1} parent=27 // pred_fallthru
          _
        // Predicated region
        $region45: #{_gep_forward.1} parent=27 // pred_check
          %p460 = pneg %p137
        $region46: #{_gep_forward.1} parent=27 // pred_check_branch
          %462 = sbr.rel (%p460) target = $region48
        $region47: #{_gep_forward.1} parent=27 // pred_region
          _
        $region48: #{_gep_forward.1} parent=27 // pred_fallthru
          _
      $region28: #{_gep_forward.1} parent=5 // pred_fallthru
        _
      %p463 = scmp.le.s32.totalorder 2, %s15
      // Predicated region
      $region49: #{_gep_forward.1} parent=5 // pred_check
        %p464 = pneg %p463
      $region50: #{_gep_forward.1} parent=5 // pred_check_branch
        %466 = sbr.rel (%p464) target = $region52
      $region51: #{_gep_forward.1} parent=5 // pred_region
        %s467 = ssub.s32 %s15, 2
        // Predicated region
        $region53: #{_gep_forward.1} parent=51 // pred_check
          %p468 = pneg %p91
        $region54: #{_gep_forward.1} parent=51 // pred_check_branch
          %470 = sbr.rel (%p468) target = $region56
        $region55: #{_gep_forward.1} parent=51 // pred_region
          %p471 = scmp.lt.s32.totalorder %s21, 1
          %s472 = scalar_select %p471, %s21, 1
          %s473 = scalar_lea.vmem %s2, %s472
        $region56: #{_gep_forward.1} parent=51 // pred_fallthru
          _
        // Predicated region
        $region57: #{_gep_forward.1} parent=51 // pred_check
          %p474 = pneg %p117
        $region58: #{_gep_forward.1} parent=51 // pred_check_branch
          %476 = sbr.rel (%p474) target = $region60
        $region59: #{_gep_forward.1} parent=51 // pred_region
          %p477 = scmp.lt.s32.totalorder %s21, 1
          %s478 = scalar_select %p477, %s21, 1
          %s479 = scalar_lea.vmem %s3, %s478
        $region60: #{_gep_forward.1} parent=51 // pred_fallthru
          _
        // Predicated region
        $region61: #{_gep_forward.1} parent=51 // pred_check
          %p480 = pneg %p143
        $region62: #{_gep_forward.1} parent=51 // pred_check_branch
          %482 = sbr.rel (%p480) target = $region64
        $region63: #{_gep_forward.1} parent=51 // pred_region
          %p483 = scmp.lt.s32.totalorder %s21, 1
          %s484 = scalar_select %p483, %s21, 1
          %s485 = scalar_lea.vmem %s4, %s484
        $region64: #{_gep_forward.1} parent=51 // pred_fallthru
          _
      $region52: #{_gep_forward.1} parent=5 // pred_fallthru
        _
    $region6: #{_gep_forward.1} parent=1 // loop_footer
      %s19 = sadd.s32 1, %s15
    $region7: #{_gep_forward.1} parent=1 // loop_footer_branch
      %14 = sbr.rel target = $region3
    $region8: #{_gep_forward.1} parent=1 // loop_exit
      _
    %486 = vsyncpa [#allocation3], 1
    %s487 = scalar_lea.sflag [#allocation3], 1
    %488 = vsyncpa %s487, 1
    %489 = vsyncpa [#allocation5], 1

// kernel: _gep_forward.1
$region0: #{_gep_forward.1}
  #allocation0 [shape = 'u32[]', space=smem, size = 0x4, offset = 0x4, fixed_abs, tag = 'smem constant byte address 0x4 - core index']
  #allocation1 [shape = 'u32[144,128]{1,0:T(1,128)}', space=vmem, size = 0x12000, scoped, tag = 'internal scratch']
  %s0 = inlined_call_operand.hbm [shape: f32[12,128], index: 0, kind: input, shape index: {}]
  %s1 = inlined_call_operand.hbm [shape: f32[128,128], index: 1, kind: input, shape index: {}]
  %s2 = inlined_call_operand.vmem [shape: f32[2,1,128], index: 2, kind: output, shape index: {0}]
  %s3 = inlined_call_operand.vmem [shape: f32[2,1,128], index: 3, kind: output, shape index: {1}]
  %s4 = inlined_call_operand.vmem [shape: f32[2,1,128], index: 4, kind: output, shape index: {2}]
  %5 = xla_tuple %s2, %s3, %s4
  %s6 = sld [smem:[#allocation0]]
  $region65: #{_gep_forward.1} parent=0
    _
  %s8 = ssub.s32 1, %s6
  %s9 = scalar_select 0, %s8, %s6
  $region1: #{_gep_forward.1} parent=0
    #allocation2 [shape = 'u8[8192]{0}', space=vmem, size = 0x2000, scoped, tag = 'input window, operand 0']
    #allocation3 [shape = 's32[2]{0}', space=sflag, size = 0x8, scoped, tag = 'scoped memory for _gep_forward.1']
    #allocation4 [shape = 'u8[65536]{0}', space=vmem, size = 0x10000, scoped, tag = 'input window, operand 1, single buffered']
    #allocation5 [shape = 's32[1]{0}', space=sflag, size = 0x4, scoped, tag = 'scoped memory for _gep_forward.1']
    %10 = vsyncpa [#allocation3], 0
    %s11 = scalar_lea.sflag [#allocation3], 1
    %12 = vsyncpa %s11, 0
    %13 = vsyncpa [#allocation5], 0
    loop: start=0, step=1, limit=4
    $region2: #{_gep_forward.1} parent=1 // loop_pre_header
      _
    $region3: #{_gep_forward.1} parent=1 // loop_header
      %s15 = sphi 0, %s19
      %p16 = scmp.ge.s32.totalorder %s15, 4
      %s25 = sphi 0, %s27
      %s28 = sphi 0, %s25
      %s29 = sphi 0, %s28
      %s45 = sphi 0, %s29
      %s49 = sphi 0, %s49
      %s51 = sphi 0, %s49
      %s52 = sphi 0, %s51
      %s66 = sphi 0, %s52
      %s72 = sphi 0, %s74
      %s75 = sphi 0, %s72
      %s76 = sphi 0, %s75
      %s92 = sphi 0, %s76
      %s98 = sphi 0, %s100
      %s101 = sphi 0, %s98
      %s102 = sphi 0, %s101
      %s118 = sphi 0, %s102
      %s124 = sphi 0, %s126
      %s127 = sphi 0, %s124
      %s128 = sphi 0, %s127
      %s144 = sphi 0, %s128
    $region4: #{_gep_forward.1} parent=1 // loop_header_branch
      %18 = sbr.rel (%p16) target = $region8
    $region5: #{_gep_forward.1} parent=1 // loop_body
      %s20 = ssub.s32 %s15, 1
      %s21 = ssub.s32 %s15, 2
      %s22 = sadd.s32 %s15, 1
      %s23 = ssub.s32 %s15, %s22
      %p24 = scmp.eq.s32.totalorder %s23, 0
      %s26 = sadd.s32 %s25, 1
      %s27 = scalar_select %p24, %s25, %s26
      %p30 = pneg %p24
      %p31 = scmp.eq.s32.totalorder %s15, 1
      %p32 = por %p30, %p31
      %p33 = scmp.ne.s32.totalorder %s25, %s28
      %p34 = scmp.eq.s32.totalorder %s15, 0
      %p35 = por %p33, %p34
      %p36 = scmp.ne.s32.totalorder %s25, %s28
      %p37 = scmp.eq.s32.totalorder %s20, 1
      %p38 = por %p36, %p37
      %p39 = scmp.ne.s32.totalorder %s28, %s29
      %p40 = scmp.eq.s32.totalorder %s20, 0
      %p41 = por %p39, %p40
      %p42 = scmp.ne.s32.totalorder %s28, %s29
      %p43 = scmp.eq.s32.totalorder %s21, 1
      %p44 = por %p42, %p43
      %p46 = scmp.ne.s32.totalorder %s29, %s45
      %p47 = scmp.eq.s32.totalorder %s21, 0
      %p48 = por %p46, %p47
      %s50 = sadd.s32 %s49, 1
      %p53 = scmp.eq.s32.totalorder %s15, 1
      %p54 = scmp.ne.s32.totalorder %s49, %s51
      %p55 = scmp.eq.s32.totalorder %s15, 0
      %p56 = por %p54, %p55
      %p57 = scmp.ne.s32.totalorder %s49, %s51
      %p58 = scmp.eq.s32.totalorder %s20, 1
      %p59 = por %p57, %p58
      %p60 = scmp.ne.s32.totalorder %s51, %s52
      %p61 = scmp.eq.s32.totalorder %s20, 0
      %p62 = por %p60, %p61
      %p63 = scmp.ne.s32.totalorder %s51, %s52
      %p64 = scmp.eq.s32.totalorder %s21, 1
      %p65 = por %p63, %p64
      %p67 = scmp.ne.s32.totalorder %s52, %s66
      %p68 = scmp.eq.s32.totalorder %s21, 0
      %p69 = por %p67, %p68
      %s70 = ssub.s32 %s15, %s22
      %p71 = scmp.eq.s32.totalorder %s70, 0
      %s73 = sadd.s32 %s72, 1
      %s74 = scalar_select %p71, %s72, %s73
      %p77 = pneg %p71
      %p78 = scmp.eq.s32.totalorder %s15, 1
      %p79 = por %p77, %p78
      %p80 = scmp.ne.s32.totalorder %s72, %s75
      %p81 = scmp.eq.s32.totalorder %s15, 0
      %p82 = por %p80, %p81
      %p83 = scmp.ne.s32.totalorder %s72, %s75
      %p84 = scmp.eq.s32.totalorder %s20, 1
      %p85 = por %p83, %p84
      %p86 = scmp.ne.s32.totalorder %s75, %s76
      %p87 = scmp.eq.s32.totalorder %s20, 0
      %p88 = por %p86, %p87
      %p89 = scmp.ne.s32.totalorder %s75, %s76
      %p90 = scmp.eq.s32.totalorder %s21, 1
      %p91 = por %p89, %p90
      %p93 = scmp.ne.s32.totalorder %s76, %s92
      %p94 = scmp.eq.s32.totalorder %s21, 0
      %p95 = por %p93, %p94
      %s96 = ssub.s32 %s15, %s22
      %p97 = scmp.eq.s32.totalorder %s96, 0
      %s99 = sadd.s32 %s98, 1
      %s100 = scalar_select %p97, %s98, %s99
      %p103 = pneg %p97
      %p104 = scmp.eq.s32.totalorder %s15, 1
      %p105 = por %p103, %p104
      %p106 = scmp.ne.s32.totalorder %s98, %s101
      %p107 = scmp.eq.s32.totalorder %s15, 0
      %p108 = por %p106, %p107
      %p109 = scmp.ne.s32.totalorder %s98, %s101
      %p110 = scmp.eq.s32.totalorder %s20, 1
      %p111 = por %p109, %p110
      %p112 = scmp.ne.s32.totalorder %s101, %s102
      %p113 = scmp.eq.s32.totalorder %s20, 0
      %p114 = por %p112, %p113
      %p115 = scmp.ne.s32.totalorder %s101, %s102
      %p116 = scmp.eq.s32.totalorder %s21, 1
      %p117 = por %p115, %p116
      %p119 = scmp.ne.s32.totalorder %s102, %s118
      %p120 = scmp.eq.s32.totalorder %s21, 0
      %p121 = por %p119, %p120
      %s122 = ssub.s32 %s15, %s22
      %p123 = scmp.eq.s32.totalorder %s122, 0
      %s125 = sadd.s32 %s124, 1
      %s126 = scalar_select %p123, %s124, %s125
      %p129 = pneg %p123
      %p130 = scmp.eq.s32.totalorder %s15, 1
      %p131 = por %p129, %p130
      %p132 = scmp.ne.s32.totalorder %s124, %s127
      %p133 = scmp.eq.s32.totalorder %s15, 0
      %p134 = por %p132, %p133
      %p135 = scmp.ne.s32.totalorder %s124, %s127
      %p136 = scmp.eq.s32.totalorder %s20, 1
      %p137 = por %p135, %p136
      %p138 = scmp.ne.s32.totalorder %s127, %s128
      %p139 = scmp.eq.s32.totalorder %s20, 0
      %p140 = por %p138, %p139
      %p141 = scmp.ne.s32.totalorder %s127, %s128
      %p142 = scmp.eq.s32.totalorder %s21, 1
      %p143 = por %p141, %p142
      %p145 = scmp.ne.s32.totalorder %s128, %s144
      %p146 = scmp.eq.s32.totalorder %s21, 0
      %p147 = por %p145, %p146
      %p148 = scmp.le.s32.totalorder 1, %s15
      %p149 = scmp.lt.s32.totalorder %s15, 3
      %p150 = pnand %p148, %p149
      %p151 = pneg %p150
      // Predicated region
      $region9: #{_gep_forward.1} parent=5 // pred_check
        _
      $region10: #{_gep_forward.1} parent=5 // pred_check_branch
        %153 = sbr.rel (%p150) target = $region12
      $region11: #{_gep_forward.1} parent=5 // pred_region
        %s154 = ssub.s32 %s15, 1
        // Predicated region
        $region13: #{_gep_forward.1} parent=11 // pred_check
          %p155 = pneg %p62
        $region14: #{_gep_forward.1} parent=11 // pred_check_branch
          %157 = sbr.rel (%p155) target = $region16
        $region15: #{_gep_forward.1} parent=11 // pred_region
          %s159 = ssub.s32 2048, 2048
          %160 = vsyncadd [#allocation5], %s159
          %s161 = sshll.u32 [#allocation4], 4
          %s162 = int_to_ptr.vmem [resolvable:$true] %s161
          %167 = dma.hbm_to_vmem [thread:$0]  %s1, 2048, %s162, [#allocation5], 128, 128, 8
        $region16: #{_gep_forward.1} parent=11 // pred_fallthru
          _
      $region12: #{_gep_forward.1} parent=5 // pred_fallthru
        _
      %p168 = scmp.lt.s32.totalorder %s15, 2
      // Predicated region
      $region17: #{_gep_forward.1} parent=5 // pred_check
        %p169 = pneg %p168
      $region18: #{_gep_forward.1} parent=5 // pred_check_branch
        %171 = sbr.rel (%p169) target = $region20
      $region19: #{_gep_forward.1} parent=5 // pred_region
        // Predicated region
        $region21: #{_gep_forward.1} parent=19 // pred_check
          %p172 = pneg %p35
        $region22: #{_gep_forward.1} parent=19 // pred_check_branch
          %174 = sbr.rel (%p172) target = $region24
        $region23: #{_gep_forward.1} parent=19 // pred_region
          %s175 = sand.u32 %s25, 1
          %s176 = scalar_lea.sflag [#allocation3], %s175
          %s177 = sand.u32 %s25, 1
          %s178 = smul.addr %s177, 8
          %s179 = scalar_lea.vmem [#allocation2], %s178
          %s181 = ssub.s32 128, 128
          %182 = vsyncadd %s176, %s181
          %s183 = smul.addr %s15, 128
          %s184 = scalar_lea.hbm %s0, %s183
          %s186 = sshll.u32 %s179, 4
          %s187 = int_to_ptr.vmem [resolvable:$true] %s186
          %189 = dma.hbm_to_vmem [thread:$0]  %s184, 128, %s187, %s176
        $region24: #{_gep_forward.1} parent=19 // pred_fallthru
          _
      $region20: #{_gep_forward.1} parent=5 // pred_fallthru
        _
      %p190 = scmp.le.s32.totalorder 1, %s15
      %p191 = scmp.lt.s32.totalorder %s15, 3
      %p192 = pnand %p190, %p191
      %p193 = pneg %p192
      // Predicated region
      $region25: #{_gep_forward.1} parent=5 // pred_check
        _
      $region26: #{_gep_forward.1} parent=5 // pred_check_branch
        %195 = sbr.rel (%p192) target = $region28
      $region27: #{_gep_forward.1} parent=5 // pred_region
        %s196 = ssub.s32 %s15, 1
        %s197 = sand.u32 %s28, 1
        %s198 = scalar_lea.sflag [#allocation3], %s197
        %s199 = sand.u32 %s28, 1
        %s200 = smul.addr %s199, 8
        %s201 = scalar_lea.vmem [#allocation2], %s200
        // Predicated region
        $region29: #{_gep_forward.1} parent=27 // pred_check
          %p202 = pneg %p41
        $region30: #{_gep_forward.1} parent=27 // pred_check_branch
          %204 = sbr.rel (%p202) target = $region32
        $region31: #{_gep_forward.1} parent=27 // pred_region
          %205 = dma.done %s198, 128
        $region32: #{_gep_forward.1} parent=27 // pred_fallthru
          _
        // Predicated region
        $region33: #{_gep_forward.1} parent=27 // pred_check
          %p206 = pneg %p62
        $region34: #{_gep_forward.1} parent=27 // pred_check_branch
          %208 = sbr.rel (%p206) target = $region36
        $region35: #{_gep_forward.1} parent=27 // pred_region
          %209 = dma.done [#allocation5], 2048
        $region36: #{_gep_forward.1} parent=27 // pred_fallthru
          _
        %s210 = sand.u32 %s28, 1
        %s211 = scalar_lea.sflag [#allocation3], %s210
        %s212 = sand.u32 %s28, 1
        %s213 = smul.addr %s212, 8
        %s214 = scalar_lea.vmem [#allocation2], %s213
        %p215 = pneg %p41
        %p216 = pneg %p38
        %p217 = pneg %p62
        %p218 = pneg %p59
        %p219 = pneg %p88
        %p220 = pneg %p85
        %p221 = scmp.lt.s32.totalorder %s20, 1
        %s222 = scalar_select %p221, %s20, 1
        %s223 = scalar_lea.vmem %s2, %s222
        %p224 = pneg %p114
        %p225 = pneg %p111
        %p226 = scmp.lt.s32.totalorder %s20, 1
        %s227 = scalar_select %p226, %s20, 1
        %s228 = scalar_lea.vmem %s3, %s227
        %p229 = pneg %p140
        %p230 = pneg %p137
        %p231 = scmp.lt.s32.totalorder %s20, 1
        %s232 = scalar_select %p231, %s20, 1
        %s233 = scalar_lea.vmem %s4, %s232
        %p234 = scmp.lt.s32.totalorder %s20, 1
        %s235 = scalar_select %p234, %s20, 1
        %s236 = scalar_lea.vmem %s2, %s235
        %p237 = scmp.lt.s32.totalorder %s20, 1
        %s238 = scalar_select %p237, %s20, 1
        %s239 = scalar_lea.vmem %s3, %s238
        %p240 = scmp.lt.s32.totalorder %s20, 1
        %s241 = scalar_select %p240, %s20, 1
        %s242 = scalar_lea.vmem %s4, %s241
        %v243 = vld [vmem:[%s201] sm:$0xff]
        %s244 = smul.u32 %s20, 8
        %v245 = vlaneseq
        %v246 = vshrl.u32 %v245, 7
        %v247 = vstv %s244
        %v248 = vadd.s32 %v247, %v246
        %vm249 = vcmp.lt.s32.totalorder %v248, 12
        %v250 = vsel %vm249, 1, 0
        %vm251 = vcmp.eq.s32.totalorder %v250, 1
        %v252 = vsel %vm251, %v243, 0.0
        %v253 = vld [vmem:[#allocation4] sm:$0xff]
        %v254 = vld [vmem:[#allocation4 + $0x8] sm:$0xff]
        %v255 = vld [vmem:[#allocation4 + $0x10] sm:$0xff]
        %v256 = vld [vmem:[#allocation4 + $0x18] sm:$0xff]
        %v257 = vld [vmem:[#allocation4 + $0x20] sm:$0xff]
        %v258 = vld [vmem:[#allocation4 + $0x28] sm:$0xff]
        %v259 = vld [vmem:[#allocation4 + $0x30] sm:$0xff]
        %v260 = vld [vmem:[#allocation4 + $0x38] sm:$0xff]
        %v261 = vld [vmem:[#allocation4 + $0x40] sm:$0xff]
        %v262 = vld [vmem:[#allocation4 + $0x48] sm:$0xff]
        %v263 = vld [vmem:[#allocation4 + $0x50] sm:$0xff]
        %v264 = vld [vmem:[#allocation4 + $0x58] sm:$0xff]
        %v265 = vld [vmem:[#allocation4 + $0x60] sm:$0xff]
        %v266 = vld [vmem:[#allocation4 + $0x68] sm:$0xff]
        %v267 = vld [vmem:[#allocation4 + $0x70] sm:$0xff]
        %v268 = vld [vmem:[#allocation4 + $0x78] sm:$0xff]
        %269 = vmatprep.subr.mxu0 0.0
        %270 = vmatpush1.msra.mxu0 %v253
        %271 = vmatprep.subr.mxu0 0.0
        %272 = vmatpush1.msra.mxu0 %v254
        %273 = vmatprep.subr.mxu0 0.0
        %274 = vmatpush1.msra.mxu0 %v255
        %275 = vmatprep.subr.mxu0 0.0
        %276 = vmatpush1.msra.mxu0 %v256
        %277 = vmatprep.subr.mxu0 0.0
        %278 = vmatpush1.msra.mxu0 %v257
        %279 = vmatprep.subr.mxu0 0.0
        %280 = vmatpush1.msra.mxu0 %v258
        %281 = vmatprep.subr.mxu0 0.0
        %282 = vmatpush1.msra.mxu0 %v259
        %283 = vmatprep.subr.mxu0 0.0
        %284 = vmatpush1.msra.mxu0 %v260
        %285 = vmatprep.subr.mxu0 0.0
        %286 = vmatpush1.msra.mxu0 %v261
        %287 = vmatprep.subr.mxu0 0.0
        %288 = vmatpush1.msra.mxu0 %v262
        %289 = vmatprep.subr.mxu0 0.0
        %290 = vmatpush1.msra.mxu0 %v263
        %291 = vmatprep.subr.mxu0 0.0
        %292 = vmatpush1.msra.mxu0 %v264
        %293 = vmatprep.subr.mxu0 0.0
        %294 = vmatpush1.msra.mxu0 %v265
        %295 = vmatprep.subr.mxu0 0.0
        %296 = vmatpush1.msra.mxu0 %v266
        %297 = vmatprep.subr.mxu0 0.0
        %298 = vmatpush1.msra.mxu0 %v267
        %299 = vmatprep.subr.mxu0 0.0
        %300 = vmatpush1.msra.mxu0 %v268
        %301 = vmatprep.subr.mxu0 0.0
        %302 = vmatpush1.msra.mxu0 0.0
        %303 = vmatprep.subr.mxu0 0.0
        %304 = vmatpush1.msra.mxu0 0.0
        %305 = vmatprep.subr.mxu0 0.0
        %306 = vmatpush1.msra.mxu0 0.0
        %307 = vmatprep.subr.mxu0 0.0
        %308 = vmatpush1.msra.mxu0 0.0
        %309 = vmatprep.subr.mxu0 0.0
        %310 = vmatpush1.msra.mxu0 0.0
        %311 = vmatprep.subr.mxu0 0.0
        %312 = vmatpush1.msra.mxu0 0.0
        %313 = vmatprep.subr.mxu0 0.0
        %314 = vmatpush1.msra.mxu0 0.0
        %315 = vmatprep.subr.mxu0 0.0
        %316 = vmatpush1.msra.mxu0 0.0
        %317 = vmatprep.subr.mxu0 0.0
        %318 = vmatpush1.msra.mxu0 0.0
        %319 = vmatprep.subr.mxu0 0.0
        %320 = vmatpush1.msra.mxu0 0.0
        %321 = vmatprep.subr.mxu0 0.0
        %322 = vmatpush1.msra.mxu0 0.0
        %323 = vmatprep.subr.mxu0 0.0
        %324 = vmatpush1.msra.mxu0 0.0
        %325 = vmatprep.subr.mxu0 0.0
        %326 = vmatpush1.msra.mxu0 0.0
        %327 = vmatprep.subr.mxu0 0.0
        %328 = vmatpush1.msra.mxu0 0.0
        %329 = vmatprep.subr.mxu0 0.0
        %330 = vmatpush1.msra.mxu0 0.0
        %331 = vmatprep.subr.mxu0 0.0
        %332 = vmatpush1.msra.mxu0 0.0
        %333 = vmatprep.mubr.f32.mxu0 0.0
        %334 = vmatmul.mubr.f32.gmra.mrb[0].mxu0 %v252
        %v335 = vpop.f32.mrb[0].mxu0
        %v336 = vadd.f32 0.0, %v335
        %v337 = vpop.f32.mrb[0].mxu0
        %338 = vdwg.mxu0
        %v339 = vmul.f32 %v336, %v336
        %340 = vadd.xlane.f32.xlu0 %v339
        %v341 = vpop.xlane.xlu0 %340
        %v342 = vmax.f32 %v341, 1e-30
        %v343 = vrsqrt.pop %v342
        %v344 = vmin.f32 %v343, 1.0
        %v345 = vmul.f32 %v336, %v344
        %v346 = vrot.slane %v345, 4
        %v347 = vadd.f32 %v345, %v346
        %v348 = vrot.slane %v347, 2
        %v349 = vadd.f32 %v347, %v348
        %v350 = vrot.slane %v349, 1
        %v351 = vadd.f32 %v349, %v350
        %352 = vst [vmem:[%s236] sm:$0x1] %v351
        %353 = vmatprep.subr.mxu0 0.0
        %354 = vmatpush1.xpose.msra.mxu0 %v253
        %355 = vmatprep.subr.mxu0 0.0
        %356 = vmatpush1.xpose.msra.mxu0 %v254
        %357 = vmatprep.subr.mxu0 0.0
        %358 = vmatpush1.xpose.msra.mxu0 %v255
        %359 = vmatprep.subr.mxu0 0.0
        %360 = vmatpush1.xpose.msra.mxu0 %v256
        %361 = vmatprep.subr.mxu0 0.0
        %362 = vmatpush1.xpose.msra.mxu0 %v257
        %363 = vmatprep.subr.mxu0 0.0
        %364 = vmatpush1.xpose.msra.mxu0 %v258
        %365 = vmatprep.subr.mxu0 0.0
        %366 = vmatpush1.xpose.msra.mxu0 %v259
        %367 = vmatprep.subr.mxu0 0.0
        %368 = vmatpush1.xpose.msra.mxu0 %v260
        %369 = vmatprep.subr.mxu0 0.0
        %370 = vmatpush1.xpose.msra.mxu0 %v261
        %371 = vmatprep.subr.mxu0 0.0
        %372 = vmatpush1.xpose.msra.mxu0 %v262
        %373 = vmatprep.subr.mxu0 0.0
        %374 = vmatpush1.xpose.msra.mxu0 %v263
        %375 = vmatprep.subr.mxu0 0.0
        %376 = vmatpush1.xpose.msra.mxu0 %v264
        %377 = vmatprep.subr.mxu0 0.0
        %378 = vmatpush1.xpose.msra.mxu0 %v265
        %379 = vmatprep.subr.mxu0 0.0
        %380 = vmatpush1.xpose.msra.mxu0 %v266
        %381 = vmatprep.subr.mxu0 0.0
        %382 = vmatpush1.xpose.msra.mxu0 %v267
        %383 = vmatprep.subr.mxu0 0.0
        %384 = vmatpush1.xpose.msra.mxu0 %v268
        %385 = vmatprep.subr.mxu0 0.0
        %386 = vmatpush1.xpose.msra.mxu0 0.0
        %387 = vmatprep.subr.mxu0 0.0
        %388 = vmatpush1.xpose.msra.mxu0 0.0
        %389 = vmatprep.subr.mxu0 0.0
        %390 = vmatpush1.xpose.msra.mxu0 0.0
        %391 = vmatprep.subr.mxu0 0.0
        %392 = vmatpush1.xpose.msra.mxu0 0.0
        %393 = vmatprep.subr.mxu0 0.0
        %394 = vmatpush1.xpose.msra.mxu0 0.0
        %395 = vmatprep.subr.mxu0 0.0
        %396 = vmatpush1.xpose.msra.mxu0 0.0
        %397 = vmatprep.subr.mxu0 0.0
        %398 = vmatpush1.xpose.msra.mxu0 0.0
        %399 = vmatprep.subr.mxu0 0.0
        %400 = vmatpush1.xpose.msra.mxu0 0.0
        %401 = vmatprep.subr.mxu0 0.0
        %402 = vmatpush1.xpose.msra.mxu0 0.0
        %403 = vmatprep.subr.mxu0 0.0
        %404 = vmatpush1.xpose.msra.mxu0 0.0
        %405 = vmatprep.subr.mxu0 0.0
        %406 = vmatpush1.xpose.msra.mxu0 0.0
        %407 = vmatprep.subr.mxu0 0.0
        %408 = vmatpush1.xpose.msra.mxu0 0.0
        %409 = vmatprep.subr.mxu0 0.0
        %410 = vmatpush1.xpose.msra.mxu0 0.0
        %411 = vmatprep.subr.mxu0 0.0
        %412 = vmatpush1.xpose.msra.mxu0 0.0
        %413 = vmatprep.subr.mxu0 0.0
        %414 = vmatpush1.xpose.msra.mxu0 0.0
        %415 = vmatprep.subr.mxu0 0.0
        %416 = vmatpush1.xpose.msra.mxu0 0.0
        %417 = vmatprep.mubr.f32.mxu0 0.0
        %418 = vmatmul.mubr.f32.gmra.mrb[0].mxu0 %v336
        %v419 = vpop.f32.mrb[0].mxu0
        %v420 = vadd.f32 0.0, %v419
        %v421 = vpop.f32.mrb[0].mxu0
        %422 = vdwg.mxu0
        %v423 = vsub.f32 %v252, %v420
        %v424 = vmul.f32 %v423, %v423
        %425 = vadd.xlane.f32.xlu0 %v424
        %v426 = vpop.xlane.xlu0 %425
        %v427 = vmax.f32 %v426, 1e-30
        %v428 = vrsqrt.pop %v427
        %v429 = vmin.f32 %v428, 1.0
        %v430 = vmul.f32 %v423, %v429
        %v431 = vrot.slane %v430, 4
        %v432 = vadd.f32 %v430, %v431
        %v433 = vrot.slane %v432, 2
        %v434 = vadd.f32 %v432, %v433
        %v435 = vrot.slane %v434, 1
        %v436 = vadd.f32 %v434, %v435
        %437 = vst [vmem:[%s239] sm:$0x1] %v436
        %v438 = vrot.slane %v252, 4
        %v439 = vadd.f32 %v252, %v438
        %v440 = vrot.slane %v439, 2
        %v441 = vadd.f32 %v439, %v440
        %v442 = vrot.slane %v441, 1
        %v443 = vadd.f32 %v441, %v442
        %444 = vst [vmem:[%s242] sm:$0x1] %v443
        %p445 = scmp.lt.s32.totalorder %s20, 1
        %s446 = scalar_select %p445, %s20, 1
        %s447 = scalar_lea.vmem %s2, %s446
        %p448 = scmp.lt.s32.totalorder %s20, 1
        %s449 = scalar_select %p448, %s20, 1
        %s450 = scalar_lea.vmem %s3, %s449
        %p451 = scmp.lt.s32.totalorder %s20, 1
        %s452 = scalar_select %p451, %s20, 1
        %s453 = scalar_lea.vmem %s4, %s452
        // Predicated region
        $region37: #{_gep_forward.1} parent=27 // pred_check
          %p454 = pneg %p85
        $region38: #{_gep_forward.1} parent=27 // pred_check_branch
          %456 = sbr.rel (%p454) target = $region40
        $region39: #{_gep_forward.1} parent=27 // pred_region
          _
        $region40: #{_gep_forward.1} parent=27 // pred_fallthru
          _
        // Predicated region
        $region41: #{_gep_forward.1} parent=27 // pred_check
          %p457 = pneg %p111
        $region42: #{_gep_forward.1} parent=27 // pred_check_branch
          %459 = sbr.rel (%p457) target = $region44
        $region43: #{_gep_forward.1} parent=27 // pred_region
          _
        $region44: #{_gep_forward.1} parent=27 // pred_fallthru
          _
        // Predicated region
        $region45: #{_gep_forward.1} parent=27 // pred_check
          %p460 = pneg %p137
        $region46: #{_gep_forward.1} parent=27 // pred_check_branch
          %462 = sbr.rel (%p460) target = $region48
        $region47: #{_gep_forward.1} parent=27 // pred_region
          _
        $region48: #{_gep_forward.1} parent=27 // pred_fallthru
          _
      $region28: #{_gep_forward.1} parent=5 // pred_fallthru
        _
      %p463 = scmp.le.s32.totalorder 2, %s15
      // Predicated region
      $region49: #{_gep_forward.1} parent=5 // pred_check
        %p464 = pneg %p463
      $region50: #{_gep_forward.1} parent=5 // pred_check_branch
        %466 = sbr.rel (%p464) target = $region52
      $region51: #{_gep_forward.1} parent=5 // pred_region
        %s467 = ssub.s32 %s15, 2
        // Predicated region
        $region53: #{_gep_forward.1} parent=51 // pred_check
          %p468 = pneg %p91
        $region54: #{_gep_forward.1} parent=51 // pred_check_branch
          %470 = sbr.rel (%p468) target = $region56
        $region55: #{_gep_forward.1} parent=51 // pred_region
          %p471 = scmp.lt.s32.totalorder %s21, 1
          %s472 = scalar_select %p471, %s21, 1
          %s473 = scalar_lea.vmem %s2, %s472
        $region56: #{_gep_forward.1} parent=51 // pred_fallthru
          _
        // Predicated region
        $region57: #{_gep_forward.1} parent=51 // pred_check
          %p474 = pneg %p117
        $region58: #{_gep_forward.1} parent=51 // pred_check_branch
          %476 = sbr.rel (%p474) target = $region60
        $region59: #{_gep_forward.1} parent=51 // pred_region
          %p477 = scmp.lt.s32.totalorder %s21, 1
          %s478 = scalar_select %p477, %s21, 1
          %s479 = scalar_lea.vmem %s3, %s478
        $region60: #{_gep_forward.1} parent=51 // pred_fallthru
          _
        // Predicated region
        $region61: #{_gep_forward.1} parent=51 // pred_check
          %p480 = pneg %p143
        $region62: #{_gep_forward.1} parent=51 // pred_check_branch
          %482 = sbr.rel (%p480) target = $region64
        $region63: #{_gep_forward.1} parent=51 // pred_region
          %p483 = scmp.lt.s32.totalorder %s21, 1
          %s484 = scalar_select %p483, %s21, 1
          %s485 = scalar_lea.vmem %s4, %s484
        $region64: #{_gep_forward.1} parent=51 // pred_fallthru
          _
      $region52: #{_gep_forward.1} parent=5 // pred_fallthru
        _
    $region6: #{_gep_forward.1} parent=1 // loop_footer
      %s19 = sadd.s32 1, %s15
    $region7: #{_gep_forward.1} parent=1 // loop_footer_branch
      %14 = sbr.rel target = $region3
    $region8: #{_gep_forward.1} parent=1 // loop_exit
      _
    %486 = vsyncpa [#allocation3], 1
    %s487 = scalar_lea.sflag [#allocation3], 1
    %488 = vsyncpa %s487, 1
    %489 = vsyncpa [#allocation5], 1

</llo_original>
